<compile_context>
chip_gen: v7x
topology: tpu7x:2x2x1
jax: 0.10.0
libtpu: 0.0.40
codegen_flags: <defaults>
</compile_context>

<pallas_src>
import functools

import jax
import jax.numpy as jnp
from jax import lax
from jax.experimental import pallas as pl
from jax.experimental.pallas import tpu as pltpu

LANE = 128


def _channel_gcn_kernel(x_ref, theta_ref, wfull_ref, madj_ref, bout_ref, o_ref,
                        *, unroll):
    # Folded constants arrive in f32 (protects fold accuracy); cast the heavy
    # MXU operands to bf16 once per grid step, outside the per-image loop.
    theta_bf = theta_ref[...].astype(jnp.bfloat16)   # (Cr, C)
    wfull_bf = wfull_ref[...].astype(jnp.bfloat16)   # (C, C)
    m_adj = madj_ref[...]                            # (Cr, Cr) f32 (tiny matmul)
    b_out = bout_ref[...]                            # (C, Cr)  f32

    def body(i, carry):
        x_bf = x_ref[i]                                                      # (C, HW) bf16
        # theta 1x1 conv: b = theta @ x
        b = jnp.dot(theta_bf, x_bf, preferred_element_type=jnp.float32)      # (Cr, HW)
        b_bf = b.astype(jnp.bfloat16)
        # G = x @ b^T  (contract the spatial/lane axis early).
        # Zero spatial padding is safe ONLY because theta has no bias:
        # padded columns of b are exactly zero and drop out of G.
        g = lax.dot_general(x_bf, b_bf, (((1,), (1,)), ((), ())),
                            preferred_element_type=jnp.float32)              # (C, Cr)
        # Channel-space work (phi, conv_adj+bn+residual, conv_wg+bn, conv3)
        # pre-folded on the host into W_full / M_adj / B_out.
        w = jnp.dot(wfull_bf, g.astype(jnp.bfloat16),
                    preferred_element_type=jnp.float32)                      # (C, Cr)
        w = jnp.dot(w, m_adj, preferred_element_type=jnp.float32) + b_out    # (C, Cr)
        # Back to spatial: y = w @ b
        y = jnp.dot(w.astype(jnp.bfloat16), b_bf,
                    preferred_element_type=jnp.float32)                      # (C, HW)
        # Residual + ReLU in f32 (v5e has no bf16 VPU path), lane-dense store.
        o_ref[i] = jnp.maximum(x_bf.astype(jnp.float32) + y, 0.0).astype(o_ref.dtype)
        return carry

    lax.fori_loop(0, x_ref.shape[0], body, 0, unroll=unroll)


def _vmem_budget_bytes():
    """Usable VMEM budget: ~70% of physical, conservative 64 MiB (v7x) fallback."""
    cap = 64 << 20
    try:
        info = pltpu.get_tpu_info()
        cap = int(getattr(info, "vmem_capacity_bytes", cap))
    except Exception:
        pass
    return max(16 << 20, int(cap * 0.7))


def _pick_b_tile(n, c, cr, hw_pad, in_bytes, out_bytes, budget):
    """Largest divisor of n that (a) leaves >=2 grid steps when n>=2 so both
    v7x TensorCores get work, and (b) fits double-buffered in+out blocks plus
    in-flight f32 intermediates and weights inside the VMEM budget."""
    w_bytes = 6 * (cr * c + c * c + cr * cr + c * cr)   # f32 + in-kernel bf16 copies
    cap = max(1, -(-n // 2))                            # ceil(n/2): >=2 grid steps
    best = 1
    for bt in range(1, n + 1):
        if n % bt or bt > cap:
            continue
        live = bt if bt <= 4 else 2                     # in-flight (b, y) per unroll
        inter = live * (cr + c) * hw_pad * 4
        need = (2 * bt * c * hw_pad * (in_bytes + out_bytes)   # double-buffered io
                + inter + w_bytes + (2 << 20))
        if need <= budget:
            best = bt
    return best


def channel_gcn(x, params):
    """x: (N, C, H, W) float32, NCHW (PyTorch convention). Eval-mode BN."""
    N, C, H, W = x.shape
    HW = H * W
    phi_w = params["phi_w"]        # (2Cr, C)
    theta_w = params["theta_w"]    # (Cr, C)
    adj_w = params["adj_w"]        # (Cr, Cr)
    wg_w = params["wg_w"]          # (2Cr, 2Cr)
    c3_w = params["c3_w"]          # (C, 2Cr)
    Cr = theta_w.shape[0]

    eps = 1e-5
    # Fold eval-mode BatchNorm into scale/shift, fold the scale into the conv
    # weights and the shifts into one bias matrix.  All folds stay in f32.
    adj_scale = params["bn_adj_gamma"] / jnp.sqrt(params["bn_adj_var"] + eps)   # (Cr,)
    adj_shift = params["bn_adj_beta"] - params["bn_adj_mean"] * adj_scale       # (Cr,)
    wg_scale = params["bn_wg_gamma"] / jnp.sqrt(params["bn_wg_var"] + eps)      # (2Cr,)
    wg_shift = params["bn_wg_beta"] - params["bn_wg_mean"] * wg_scale           # (2Cr,)

    adj_scaled = adj_w * adj_scale[:, None]                                     # (Cr, Cr)
    wg_scaled = wg_w * wg_scale[:, None]                                        # (2Cr, 2Cr)

    m_adj = adj_scaled.T + jnp.eye(Cr, dtype=jnp.float32)                       # (Cr, Cr)
    w_full = c3_w @ wg_scaled @ phi_w                                           # (C, C)
    b_wg = (wg_scaled.sum(axis=1, keepdims=True) * adj_shift[None, :]
            + wg_shift[:, None])                                                # (2Cr, Cr)
    b_out = c3_w @ b_wg                                                         # (C, Cr)

    # Pad the spatial axis to a lane multiple only when needed (power-of-2
    # feature maps already are); zero pad is safe because theta has no bias.
    HW_pad = -(-HW // LANE) * LANE
    x_mat = x.reshape(N, C, HW)
    if HW_pad != HW:
        x_mat = jnp.pad(x_mat, ((0, 0), (0, 0), (0, HW_pad - HW)))
    # bf16 activations: the kernel is HBM-bound on every generation, so halving
    # input bytes is the biggest single win; all matmuls accumulate in f32.
    x_mat = x_mat.astype(jnp.bfloat16)

    out_dtype = x.dtype
    budget = _vmem_budget_bytes()
    b_tile = _pick_b_tile(N, C, Cr, HW_pad, 2, jnp.dtype(out_dtype).itemsize, budget)
    unroll = b_tile <= 4   # full unroll only for short loops (avoid spills at big C*HW)

    kernel = functools.partial(_channel_gcn_kernel, unroll=unroll)
    out = pl.pallas_call(
        kernel,
        out_shape=jax.ShapeDtypeStruct((N, C, HW_pad), out_dtype),
        grid_spec=pltpu.PrefetchScalarGridSpec(
            num_scalar_prefetch=0,
            grid=(N // b_tile,),
            in_specs=[
                pl.BlockSpec((b_tile, C, HW_pad), lambda i: (i, 0, 0)),  # x
                pl.BlockSpec((Cr, C), lambda i: (0, 0)),                 # theta
                pl.BlockSpec((C, C), lambda i: (0, 0)),                  # W_full
                pl.BlockSpec((Cr, Cr), lambda i: (0, 0)),                # M_adj
                pl.BlockSpec((C, Cr), lambda i: (0, 0)),                 # B_out
            ],
            out_specs=pl.BlockSpec((b_tile, C, HW_pad), lambda i: (i, 0, 0)),
        ),
        compiler_params=pltpu.CompilerParams(
            dimension_semantics=("parallel",),
            vmem_limit_bytes=int(budget),
        ),
    )(x_mat, theta_w, w_full, m_adj, b_out)

    if HW_pad != HW:
        out = out[:, :, :HW]
    return out.reshape(N, C, H, W)


def channel_gcn_ref(x, params):
    """Pure-JAX f32 reference (same math as the PyTorch module, eval-mode BN)."""
    N, C, H, W = x.shape
    HW = H * W
    eps = 1e-5
    xm = x.reshape(N, C, HW)
    x_sqz = jnp.einsum("oc,ncs->nos", params["phi_w"], xm)
    b = jnp.einsum("oc,ncs->nos", params["theta_w"], xm)
    z_idt = jnp.einsum("nos,nks->nok", x_sqz, b)              # (N, 2Cr, Cr)
    z = jnp.swapaxes(z_idt, 1, 2)                             # (N, Cr, 2Cr)
    z = jnp.einsum("oc,ncl->nol", params["adj_w"], z)
    s = params["bn_adj_gamma"] / jnp.sqrt(params["bn_adj_var"] + eps)
    z = z * s[None, :, None] + (params["bn_adj_beta"] -
                                params["bn_adj_mean"] * s)[None, :, None]
    z = jnp.swapaxes(z, 1, 2) + z_idt                         # (N, 2Cr, Cr)
    z = jnp.einsum("oc,ncl->nol", params["wg_w"], z)
    s = params["bn_wg_gamma"] / jnp.sqrt(params["bn_wg_var"] + eps)
    z = z * s[None, :, None] + (params["bn_wg_beta"] -
                                params["bn_wg_mean"] * s)[None, :, None]
    y = jnp.einsum("nok,nks->nos", z, b)                      # (N, 2Cr, HW)
    y = jnp.einsum("oc,ncs->nos", params["c3_w"], y)          # (N, C, HW)
    return jnp.maximum(xm + y, 0.0).reshape(N, C, H, W)


def init_params(key, planes, ratio=4):
    Cr = planes // ratio
    C2 = Cr * 2
    ks = jax.random.split(key, 7)
    return {
        "phi_w": 0.1 * jax.random.normal(ks[0], (C2, planes), jnp.float32),
        "theta_w": 0.1 * jax.random.normal(ks[1], (Cr, planes), jnp.float32),
        "adj_w": 0.1 * jax.random.normal(ks[2], (Cr, Cr), jnp.float32),
        "wg_w": 0.1 * jax.random.normal(ks[3], (C2, C2), jnp.float32),
        "c3_w": 0.1 * jax.random.normal(ks[4], (planes, C2), jnp.float32),
        "bn_adj_gamma": 1.0 + 0.05 * jax.random.normal(ks[5], (Cr,), jnp.float32),
        "bn_adj_beta": jnp.zeros((Cr,), jnp.float32),
        "bn_adj_mean": jnp.zeros((Cr,), jnp.float32),
        "bn_adj_var": jnp.ones((Cr,), jnp.float32),
        "bn_wg_gamma": 1.0 + 0.05 * jax.random.normal(ks[6], (C2,), jnp.float32),
        "bn_wg_beta": jnp.zeros((C2,), jnp.float32),
        "bn_wg_mean": jnp.zeros((C2,), jnp.float32),
        "bn_wg_var": jnp.ones((C2,), jnp.float32),
    }


if __name__ == "__main__":
    planes, ratio = 16, 4
    N, H, W = 2, 16, 16

    key = jax.random.PRNGKey(0)
    kx, kp = jax.random.split(key)
    x = jax.random.normal(kx, (N, planes, H, W), jnp.float32)
    params = init_params(kp, planes, ratio)

    out = jax.block_until_ready(channel_gcn(x, params))

    ref = channel_gcn_ref(x, params)
    assert out.shape == (N, planes, H, W)
    # bf16 activations/operands inside the kernel -> compare against the f32
    # reference with a bf16-appropriate tolerance.
    assert jnp.allclose(out, ref, atol=5e-2, rtol=5e-2), "mismatch vs JAX reference"

    print("KERNEL_OK")
</pallas_src>

<mosaic_0001>
module attributes {stable_mosaic.version = 11 : i64} {
  func.func @_channel_gcn_kernel(%arg0: i32, %arg1: memref<1x16x256xbf16, #tpu.memory_space<vmem>>, %arg2: memref<4x16xf32, #tpu.memory_space<vmem>>, %arg3: memref<16x16xf32, #tpu.memory_space<vmem>>, %arg4: memref<4x4xf32, #tpu.memory_space<vmem>>, %arg5: memref<16x4xf32, #tpu.memory_space<vmem>>, %arg6: memref<1x16x256xf32, #tpu.memory_space<vmem>>) attributes {dimension_semantics = [#tpu.dimension_semantics<parallel>], iteration_bounds = array<i64: 2>, scalar_prefetch = 0 : i64, scratch_operands = 0 : i64, tpu.core_type = #tpu.core_type<tc>, window_params = [{transform_indices = @transform_0, window_bounds = array<i64: 1, 16, 256>}, {pipeline_mode = #tpu.pipeline_mode<synchronous>, transform_indices = @transform_1, window_bounds = array<i64: 4, 16>}, {pipeline_mode = #tpu.pipeline_mode<synchronous>, transform_indices = @transform_2, window_bounds = array<i64: 16, 16>}, {pipeline_mode = #tpu.pipeline_mode<synchronous>, transform_indices = @transform_3, window_bounds = array<i64: 4, 4>}, {pipeline_mode = #tpu.pipeline_mode<synchronous>, transform_indices = @transform_4, window_bounds = array<i64: 16, 4>}, {transform_indices = @transform_5, window_bounds = array<i64: 1, 16, 256>}]} {
    %c0 = arith.constant 0 : index
    %c0_0 = arith.constant 0 : index
    %0 = vector.load %arg2[%c0, %c0_0] : memref<4x16xf32, #tpu.memory_space<vmem>>, vector<4x16xf32>
    %1 = arith.truncf %0 : vector<4x16xf32> to vector<4x16xbf16>
    %c0_1 = arith.constant 0 : index
    %c0_2 = arith.constant 0 : index
    %2 = vector.load %arg3[%c0_1, %c0_2] : memref<16x16xf32, #tpu.memory_space<vmem>>, vector<16x16xf32>
    %3 = arith.truncf %2 : vector<16x16xf32> to vector<16x16xbf16>
    %c0_3 = arith.constant 0 : index
    %c0_4 = arith.constant 0 : index
    %4 = vector.load %arg4[%c0_3, %c0_4] : memref<4x4xf32, #tpu.memory_space<vmem>>, vector<4x4xf32>
    %c0_5 = arith.constant 0 : index
    %c0_6 = arith.constant 0 : index
    %5 = vector.load %arg5[%c0_5, %c0_6] : memref<16x4xf32, #tpu.memory_space<vmem>>, vector<16x4xf32>
    %c0_i32 = arith.constant 0 : i32
    %6 = arith.index_cast %c0_i32 : i32 to index
    %c0_7 = arith.constant 0 : index
    %c0_8 = arith.constant 0 : index
    %7 = vector.load %arg1[%6, %c0_7, %c0_8] : memref<1x16x256xbf16, #tpu.memory_space<vmem>>, vector<1x16x256xbf16>
    %8 = vector.shape_cast %7 : vector<1x16x256xbf16> to vector<16x256xbf16>
    %cst = arith.constant dense<0.000000e+00> : vector<4x256xf32>
    %9 = tpu.matmul %1, %8, %cst {dimension_numbers = #tpu.dot_dimension_numbers<[1], [0], [0], [1], [0, 0, 1, 1], [], []>} : vector<4x16xbf16>, vector<16x256xbf16>, vector<4x256xf32> -> vector<4x256xf32>
    %10 = arith.truncf %9 : vector<4x256xf32> to vector<4x256xbf16>
    %cst_9 = arith.constant dense<0.000000e+00> : vector<16x4xf32>
    %11 = tpu.matmul %8, %10, %cst_9 {dimension_numbers = #tpu.dot_dimension_numbers<[1], [1], [0], [0], [0, 0, 1, 0], [], []>} : vector<16x256xbf16>, vector<4x256xbf16>, vector<16x4xf32> -> vector<16x4xf32>
    %12 = arith.truncf %11 : vector<16x4xf32> to vector<16x4xbf16>
    %cst_10 = arith.constant dense<0.000000e+00> : vector<16x4xf32>
    %13 = tpu.matmul %3, %12, %cst_10 {dimension_numbers = #tpu.dot_dimension_numbers<[1], [0], [0], [1], [0, 0, 1, 1], [], []>} : vector<16x16xbf16>, vector<16x4xbf16>, vector<16x4xf32> -> vector<16x4xf32>
    %cst_11 = arith.constant dense<0.000000e+00> : vector<16x4xf32>
    %14 = tpu.matmul %13, %4, %cst_11 {dimension_numbers = #tpu.dot_dimension_numbers<[1], [0], [0], [1], [0, 0, 1, 1], [], []>} : vector<16x4xf32>, vector<4x4xf32>, vector<16x4xf32> -> vector<16x4xf32>
    %15 = arith.addf %14, %5 : vector<16x4xf32>
    %16 = arith.truncf %15 : vector<16x4xf32> to vector<16x4xbf16>
    %cst_12 = arith.constant dense<0.000000e+00> : vector<16x256xf32>
    %17 = tpu.matmul %16, %10, %cst_12 {dimension_numbers = #tpu.dot_dimension_numbers<[1], [0], [0], [1], [0, 0, 1, 1], [], []>} : vector<16x4xbf16>, vector<4x256xbf16>, vector<16x256xf32> -> vector<16x256xf32>
    %18 = arith.extf %8 : vector<16x256xbf16> to vector<16x256xf32>
    %19 = arith.addf %18, %17 : vector<16x256xf32>
    %cst_13 = arith.constant 0.000000e+00 : f32
    %20 = vector.broadcast %cst_13 : f32 to vector<16x256xf32>
    %21 = arith.maximumf %19, %20 : vector<16x256xf32>
    %22 = arith.index_cast %c0_i32 : i32 to index
    %c0_14 = arith.constant 0 : index
    %c0_15 = arith.constant 0 : index
    %23 = vector.load %arg6[%22, %c0_14, %c0_15] : memref<1x16x256xf32, #tpu.memory_space<vmem>>, vector<1x16x256xf32>
    %24 = vector.shape_cast %23 : vector<1x16x256xf32> to vector<16x256xf32>
    %25 = vector.shape_cast %21 : vector<16x256xf32> to vector<1x16x256xf32>
    tpu.vector_store %arg6[%22, %c0_14, %c0_15], %25 {strides = array<i32>} : memref<1x16x256xf32, #tpu.memory_space<vmem>>, vector<1x16x256xf32>,
    %c1_i32 = arith.constant 1 : i32
    return
  }
  func.func @transform_0(%arg0: i32) -> (i32, i32, i32) {
    %c0_i32 = arith.constant 0 : i32
    %c0_i32_0 = arith.constant 0 : i32
    %c0_i32_1 = arith.constant 0 : i32
    return %arg0, %c0_i32, %c0_i32_0 : i32, i32, i32
  }
  func.func @transform_1(%arg0: i32) -> (i32, i32) {
    %c0_i32 = arith.constant 0 : i32
    %c0_i32_0 = arith.constant 0 : i32
    %c0_i32_1 = arith.constant 0 : i32
    return %c0_i32, %c0_i32_0 : i32, i32
  }
  func.func @transform_2(%arg0: i32) -> (i32, i32) {
    %c0_i32 = arith.constant 0 : i32
    %c0_i32_0 = arith.constant 0 : i32
    %c0_i32_1 = arith.constant 0 : i32
    return %c0_i32, %c0_i32_0 : i32, i32
  }
  func.func @transform_3(%arg0: i32) -> (i32, i32) {
    %c0_i32 = arith.constant 0 : i32
    %c0_i32_0 = arith.constant 0 : i32
    %c0_i32_1 = arith.constant 0 : i32
    return %c0_i32, %c0_i32_0 : i32, i32
  }
  func.func @transform_4(%arg0: i32) -> (i32, i32) {
    %c0_i32 = arith.constant 0 : i32
    %c0_i32_0 = arith.constant 0 : i32
    %c0_i32_1 = arith.constant 0 : i32
    return %c0_i32, %c0_i32_0 : i32, i32
  }
  func.func @transform_5(%arg0: i32) -> (i32, i32, i32) {
    %c0_i32 = arith.constant 0 : i32
    %c0_i32_0 = arith.constant 0 : i32
    %c0_i32_1 = arith.constant 0 : i32
    return %arg0, %c0_i32, %c0_i32_0 : i32, i32, i32
  }
}

</mosaic_0001>

<llo_original>
// kernel: tpu_custom_call.1
$region0: #{tpu_custom_call.1}
  #allocation0 [shape = 'u32[]', space=smem, size = 0x4, offset = 0x4, fixed_abs, tag = 'smem constant byte address 0x4 - core index']
  #allocation1 [shape = 'u32[144,128]{1,0:T(1,128)}', space=vmem, size = 0x12000, scoped, tag = 'internal scratch']
  %s0 = inlined_call_operand.hbm [shape: bf16[2,16,256], index: 0, kind: input, shape index: {}]
  %s1 = inlined_call_operand.vmem [shape: f32[4,16], index: 1, kind: input, shape index: {}]
  %s2 = inlined_call_operand.vmem [shape: f32[16,16], index: 2, kind: input, shape index: {}]
  %s3 = inlined_call_operand.vmem [shape: f32[4,4], index: 3, kind: input, shape index: {}]
  %s4 = inlined_call_operand.vmem [shape: f32[16,4], index: 4, kind: input, shape index: {}]
  %s5 = inlined_call_operand.hbm [shape: f32[2,16,256], index: 5, kind: output, shape index: {}]
  %s6 = sld [smem:[#allocation0]]
  $region57: #{tpu_custom_call.1} parent=0
    _
  %s8 = ssub.s32 1, %s6
  %s9 = scalar_select 0, %s8, %s6
  $region1: #{tpu_custom_call.1} parent=0
    #allocation2 [shape = 'u8[16384]{0}', space=vmem, size = 0x4000, scoped, tag = 'input window, operand 0']
    #allocation3 [shape = 's32[2]{0}', space=sflag, size = 0x8, scoped, tag = 'scoped memory for tpu_custom_call.1']
    #allocation4 [shape = 's32[2]{0}', space=sflag, size = 0x8, scoped, tag = 'scoped memory for tpu_custom_call.1']
    #allocation5 [shape = 'u8[32768]{0}', space=vmem, size = 0x8000, scoped, tag = 'output window, operand 0']
    %10 = vsyncpa [#allocation3], 0
    %s11 = scalar_lea.sflag [#allocation3], 1
    %12 = vsyncpa %s11, 0
    %13 = vsyncpa [#allocation4], 0
    %s14 = scalar_lea.sflag [#allocation4], 1
    %15 = vsyncpa %s14, 0
    loop: start=0, step=1, limit=4
    $region2: #{tpu_custom_call.1} parent=1 // loop_pre_header
      _
    $region3: #{tpu_custom_call.1} parent=1 // loop_header
      %s17 = sphi 0, %s21
      %p18 = scmp.ge.s32.totalorder %s17, 4
      %s27 = sphi 0, %s29
      %s30 = sphi 0, %s27
      %s31 = sphi 0, %s30
      %s47 = sphi 0, %s31
      %s51 = sphi 0, %s51
      %s53 = sphi 0, %s51
      %s54 = sphi 0, %s53
      %s68 = sphi 0, %s54
      %s72 = sphi 0, %s72
      %s74 = sphi 0, %s72
      %s75 = sphi 0, %s74
      %s89 = sphi 0, %s75
      %s93 = sphi 0, %s93
      %s95 = sphi 0, %s93
      %s96 = sphi 0, %s95
      %s110 = sphi 0, %s96
      %s114 = sphi 0, %s114
      %s116 = sphi 0, %s114
      %s117 = sphi 0, %s116
      %s131 = sphi 0, %s117
      %s137 = sphi 0, %s139
      %s140 = sphi 0, %s137
      %s141 = sphi 0, %s140
      %s157 = sphi 0, %s141
    $region4: #{tpu_custom_call.1} parent=1 // loop_header_branch
      %20 = sbr.rel (%p18) target = $region8
    $region5: #{tpu_custom_call.1} parent=1 // loop_body
      %s22 = ssub.s32 %s17, 1
      %s23 = ssub.s32 %s17, 2
      %s24 = sadd.s32 %s17, 1
      %s25 = ssub.s32 %s17, %s24
      %p26 = scmp.eq.s32.totalorder %s25, 0
      %s28 = sadd.s32 %s27, 1
      %s29 = scalar_select %p26, %s27, %s28
      %p32 = pneg %p26
      %p33 = scmp.eq.s32.totalorder %s17, 1
      %p34 = por %p32, %p33
      %p35 = scmp.ne.s32.totalorder %s27, %s30
      %p36 = scmp.eq.s32.totalorder %s17, 0
      %p37 = por %p35, %p36
      %p38 = scmp.ne.s32.totalorder %s27, %s30
      %p39 = scmp.eq.s32.totalorder %s22, 1
      %p40 = por %p38, %p39
      %p41 = scmp.ne.s32.totalorder %s30, %s31
      %p42 = scmp.eq.s32.totalorder %s22, 0
      %p43 = por %p41, %p42
      %p44 = scmp.ne.s32.totalorder %s30, %s31
      %p45 = scmp.eq.s32.totalorder %s23, 1
      %p46 = por %p44, %p45
      %p48 = scmp.ne.s32.totalorder %s31, %s47
      %p49 = scmp.eq.s32.totalorder %s23, 0
      %p50 = por %p48, %p49
      %s52 = sadd.s32 %s51, 1
      %p55 = scmp.eq.s32.totalorder %s17, 1
      %p56 = scmp.ne.s32.totalorder %s51, %s53
      %p57 = scmp.eq.s32.totalorder %s17, 0
      %p58 = por %p56, %p57
      %p59 = scmp.ne.s32.totalorder %s51, %s53
      %p60 = scmp.eq.s32.totalorder %s22, 1
      %p61 = por %p59, %p60
      %p62 = scmp.ne.s32.totalorder %s53, %s54
      %p63 = scmp.eq.s32.totalorder %s22, 0
      %p64 = por %p62, %p63
      %p65 = scmp.ne.s32.totalorder %s53, %s54
      %p66 = scmp.eq.s32.totalorder %s23, 1
      %p67 = por %p65, %p66
      %p69 = scmp.ne.s32.totalorder %s54, %s68
      %p70 = scmp.eq.s32.totalorder %s23, 0
      %p71 = por %p69, %p70
      %s73 = sadd.s32 %s72, 1
      %p76 = scmp.eq.s32.totalorder %s17, 1
      %p77 = scmp.ne.s32.totalorder %s72, %s74
      %p78 = scmp.eq.s32.totalorder %s17, 0
      %p79 = por %p77, %p78
      %p80 = scmp.ne.s32.totalorder %s72, %s74
      %p81 = scmp.eq.s32.totalorder %s22, 1
      %p82 = por %p80, %p81
      %p83 = scmp.ne.s32.totalorder %s74, %s75
      %p84 = scmp.eq.s32.totalorder %s22, 0
      %p85 = por %p83, %p84
      %p86 = scmp.ne.s32.totalorder %s74, %s75
      %p87 = scmp.eq.s32.totalorder %s23, 1
      %p88 = por %p86, %p87
      %p90 = scmp.ne.s32.totalorder %s75, %s89
      %p91 = scmp.eq.s32.totalorder %s23, 0
      %p92 = por %p90, %p91
      %s94 = sadd.s32 %s93, 1
      %p97 = scmp.eq.s32.totalorder %s17, 1
      %p98 = scmp.ne.s32.totalorder %s93, %s95
      %p99 = scmp.eq.s32.totalorder %s17, 0
      %p100 = por %p98, %p99
      %p101 = scmp.ne.s32.totalorder %s93, %s95
      %p102 = scmp.eq.s32.totalorder %s22, 1
      %p103 = por %p101, %p102
      %p104 = scmp.ne.s32.totalorder %s95, %s96
      %p105 = scmp.eq.s32.totalorder %s22, 0
      %p106 = por %p104, %p105
      %p107 = scmp.ne.s32.totalorder %s95, %s96
      %p108 = scmp.eq.s32.totalorder %s23, 1
      %p109 = por %p107, %p108
      %p111 = scmp.ne.s32.totalorder %s96, %s110
      %p112 = scmp.eq.s32.totalorder %s23, 0
      %p113 = por %p111, %p112
      %s115 = sadd.s32 %s114, 1
      %p118 = scmp.eq.s32.totalorder %s17, 1
      %p119 = scmp.ne.s32.totalorder %s114, %s116
      %p120 = scmp.eq.s32.totalorder %s17, 0
      %p121 = por %p119, %p120
      %p122 = scmp.ne.s32.totalorder %s114, %s116
      %p123 = scmp.eq.s32.totalorder %s22, 1
      %p124 = por %p122, %p123
      %p125 = scmp.ne.s32.totalorder %s116, %s117
      %p126 = scmp.eq.s32.totalorder %s22, 0
      %p127 = por %p125, %p126
      %p128 = scmp.ne.s32.totalorder %s116, %s117
      %p129 = scmp.eq.s32.totalorder %s23, 1
      %p130 = por %p128, %p129
      %p132 = scmp.ne.s32.totalorder %s117, %s131
      %p133 = scmp.eq.s32.totalorder %s23, 0
      %p134 = por %p132, %p133
      %s135 = ssub.s32 %s17, %s24
      %p136 = scmp.eq.s32.totalorder %s135, 0
      %s138 = sadd.s32 %s137, 1
      %s139 = scalar_select %p136, %s137, %s138
      %p142 = pneg %p136
      %p143 = scmp.eq.s32.totalorder %s17, 1
      %p144 = por %p142, %p143
      %p145 = scmp.ne.s32.totalorder %s137, %s140
      %p146 = scmp.eq.s32.totalorder %s17, 0
      %p147 = por %p145, %p146
      %p148 = scmp.ne.s32.totalorder %s137, %s140
      %p149 = scmp.eq.s32.totalorder %s22, 1
      %p150 = por %p148, %p149
      %p151 = scmp.ne.s32.totalorder %s140, %s141
      %p152 = scmp.eq.s32.totalorder %s22, 0
      %p153 = por %p151, %p152
      %p154 = scmp.ne.s32.totalorder %s140, %s141
      %p155 = scmp.eq.s32.totalorder %s23, 1
      %p156 = por %p154, %p155
      %p158 = scmp.ne.s32.totalorder %s141, %s157
      %p159 = scmp.eq.s32.totalorder %s23, 0
      %p160 = por %p158, %p159
      %p161 = scmp.le.s32.totalorder 1, %s17
      %p162 = scmp.lt.s32.totalorder %s17, 3
      %p163 = pnand %p161, %p162
      %p164 = pneg %p163
      // Predicated region
      $region9: #{tpu_custom_call.1} parent=5 // pred_check
        _
      $region10: #{tpu_custom_call.1} parent=5 // pred_check_branch
        %166 = sbr.rel (%p163) target = $region12
      $region11: #{tpu_custom_call.1} parent=5 // pred_region
        %s167 = ssub.s32 %s17, 1
        // Predicated region
        $region13: #{tpu_custom_call.1} parent=11 // pred_check
          %p168 = pneg %p64
        $region14: #{tpu_custom_call.1} parent=11 // pred_check_branch
          %170 = sbr.rel (%p168) target = $region16
        $region15: #{tpu_custom_call.1} parent=11 // pred_region
          _
        $region16: #{tpu_custom_call.1} parent=11 // pred_fallthru
          _
        // Predicated region
        $region17: #{tpu_custom_call.1} parent=11 // pred_check
          %p171 = pneg %p85
        $region18: #{tpu_custom_call.1} parent=11 // pred_check_branch
          %173 = sbr.rel (%p171) target = $region20
        $region19: #{tpu_custom_call.1} parent=11 // pred_region
          _
        $region20: #{tpu_custom_call.1} parent=11 // pred_fallthru
          _
        // Predicated region
        $region21: #{tpu_custom_call.1} parent=11 // pred_check
          %p174 = pneg %p106
        $region22: #{tpu_custom_call.1} parent=11 // pred_check_branch
          %176 = sbr.rel (%p174) target = $region24
        $region23: #{tpu_custom_call.1} parent=11 // pred_region
          _
        $region24: #{tpu_custom_call.1} parent=11 // pred_fallthru
          _
        // Predicated region
        $region25: #{tpu_custom_call.1} parent=11 // pred_check
          %p177 = pneg %p127
        $region26: #{tpu_custom_call.1} parent=11 // pred_check_branch
          %179 = sbr.rel (%p177) target = $region28
        $region27: #{tpu_custom_call.1} parent=11 // pred_region
          _
        $region28: #{tpu_custom_call.1} parent=11 // pred_fallthru
          _
      $region12: #{tpu_custom_call.1} parent=5 // pred_fallthru
        _
      %p180 = scmp.lt.s32.totalorder %s17, 2
      // Predicated region
      $region29: #{tpu_custom_call.1} parent=5 // pred_check
        %p181 = pneg %p180
      $region30: #{tpu_custom_call.1} parent=5 // pred_check_branch
        %183 = sbr.rel (%p181) target = $region32
      $region31: #{tpu_custom_call.1} parent=5 // pred_region
        // Predicated region
        $region33: #{tpu_custom_call.1} parent=31 // pred_check
          %p184 = pneg %p37
        $region34: #{tpu_custom_call.1} parent=31 // pred_check_branch
          %186 = sbr.rel (%p184) target = $region36
        $region35: #{tpu_custom_call.1} parent=31 // pred_region
          %s187 = sand.u32 %s27, 1
          %s188 = scalar_lea.sflag [#allocation3], %s187
          %s189 = sand.u32 %s27, 1
          %s190 = smul.addr %s189, 16
          %s191 = scalar_lea.vmem [#allocation2], %s190
          %s193 = ssub.s32 256, 256
          %194 = vsyncadd %s188, %s193
          %s195 = smul.addr %s17, 4
          %s196 = smul.addr %s195, 64
          %s197 = scalar_lea.hbm %s0, %s196
          %s198 = sshll.u32 %s191, 4
          %s199 = int_to_ptr.vmem [resolvable:$true] %s198
          %204 = dma.hbm_to_vmem [thread:$0]  %s197, 256, %s199, %s188, 128, 128, 8
        $region36: #{tpu_custom_call.1} parent=31 // pred_fallthru
          _
      $region32: #{tpu_custom_call.1} parent=5 // pred_fallthru
        _
      %p205 = scmp.le.s32.totalorder 1, %s17
      %p206 = scmp.lt.s32.totalorder %s17, 3
      %p207 = pnand %p205, %p206
      %p208 = pneg %p207
      // Predicated region
      $region37: #{tpu_custom_call.1} parent=5 // pred_check
        _
      $region38: #{tpu_custom_call.1} parent=5 // pred_check_branch
        %210 = sbr.rel (%p207) target = $region40
      $region39: #{tpu_custom_call.1} parent=5 // pred_region
        %s211 = ssub.s32 %s17, 1
        %s212 = sand.u32 %s30, 1
        %s213 = scalar_lea.sflag [#allocation3], %s212
        %s214 = sand.u32 %s30, 1
        %s215 = smul.addr %s214, 16
        %s216 = scalar_lea.vmem [#allocation2], %s215
        // Predicated region
        $region41: #{tpu_custom_call.1} parent=39 // pred_check
          %p217 = pneg %p43
        $region42: #{tpu_custom_call.1} parent=39 // pred_check_branch
          %219 = sbr.rel (%p217) target = $region44
        $region43: #{tpu_custom_call.1} parent=39 // pred_region
          %220 = dma.done %s213, 256
        $region44: #{tpu_custom_call.1} parent=39 // pred_fallthru
          _
        %s221 = sand.u32 %s30, 1
        %s222 = scalar_lea.sflag [#allocation3], %s221
        %s223 = sand.u32 %s30, 1
        %s224 = smul.addr %s223, 16
        %s225 = scalar_lea.vmem [#allocation2], %s224
        %p226 = pneg %p43
        %p227 = pneg %p40
        %p228 = pneg %p64
        %p229 = pneg %p61
        %p230 = pneg %p85
        %p231 = pneg %p82
        %p232 = pneg %p106
        %p233 = pneg %p103
        %p234 = pneg %p127
        %p235 = pneg %p124
        %p236 = pneg %p153
        %p237 = pneg %p150
        %s238 = sand.u32 %s140, 1
        %s239 = scalar_lea.sflag [#allocation4], %s238
        %s240 = sand.u32 %s140, 1
        %s241 = smul.addr %s240, 32
        %s242 = scalar_lea.vmem [#allocation5], %s241
        %v244 = vld [vmem:[%s1] sm:$0xf]
        %v245 = vpack.c.bf16 %v244, %v244
        %v246 = vld [vmem:[%s2] sm:$0xff]
        %v247 = vld [vmem:[%s2 + $0x8] sm:$0xff]
        %v248 = vpack.c.bf16 %v247, %v246
        %v249 = vld [vmem:[%s3] sm:$0xf]
        %v250 = vld [vmem:[%s4] sm:$0xff]
        %v251 = vld [vmem:[%s4 + $0x8] sm:$0xff]
        %v252 = vld [vmem:[%s216] sm:$0xff]
        %v253 = vld [vmem:[%s216 + $0x8] sm:$0xff]
        %v256 = vunpack.c.l.b16 %v252
        %v257 = vunpack.c.h.b16 %v252
        %v258 = vunpack.c.l.b16 %v253
        %v259 = vunpack.c.h.b16 %v253
        %v260 = vpack.c.b16 %v258, %v256
        %v261 = vpack.c.b16 %v259, %v257
        %vm264 = vcmask 130048
        %v266 = vsel %vm264, %v245, 0
        %268 = vmatprep.subr.bf16.mxu0 %v261
        %269 = vmatpush1.bf16.msra.mxu0 %v260
        %270 = vmatprep.subr.bf16.mxu0 0
        %271 = vmatpush1.bf16.msra.mxu0 0
        %272 = vmatprep.subr.bf16.mxu0 0
        %273 = vmatpush1.bf16.msra.mxu0 0
        %274 = vmatprep.subr.bf16.mxu0 0
        %275 = vmatpush1.bf16.msra.mxu0 0
        %276 = vmatprep.subr.bf16.mxu0 0
        %277 = vmatpush1.bf16.msra.mxu0 0
        %278 = vmatprep.subr.bf16.mxu0 0
        %279 = vmatpush1.bf16.msra.mxu0 0
        %280 = vmatprep.subr.bf16.mxu0 0
        %281 = vmatpush1.bf16.msra.mxu0 0
        %282 = vmatprep.subr.bf16.mxu0 0
        %283 = vmatpush1.bf16.msra.mxu0 0
        %284 = vmatprep.subr.bf16.mxu0 0
        %285 = vmatpush1.bf16.msra.mxu0 0
        %286 = vmatprep.subr.bf16.mxu0 0
        %287 = vmatpush1.bf16.msra.mxu0 0
        %288 = vmatprep.subr.bf16.mxu0 0
        %289 = vmatpush1.bf16.msra.mxu0 0
        %290 = vmatprep.subr.bf16.mxu0 0
        %291 = vmatpush1.bf16.msra.mxu0 0
        %292 = vmatprep.subr.bf16.mxu0 0
        %293 = vmatpush1.bf16.msra.mxu0 0
        %294 = vmatprep.subr.bf16.mxu0 0
        %295 = vmatpush1.bf16.msra.mxu0 0
        %296 = vmatprep.subr.bf16.mxu0 0
        %297 = vmatpush1.bf16.msra.mxu0 0
        %298 = vmatprep.subr.bf16.mxu0 0
        %299 = vmatpush1.bf16.msra.mxu0 0
        %300 = vmatprep.mubr.bf16.mxu0 0
        %301 = vmatmul.mubr.bf16.gmra.mrb[0].mxu0 %v266
        %v302 = vpop.f32.mrb[0].mxu0
        %v303 = vadd.f32 0.0, %v302
        %v304 = vpop.f32.mrb[0].mxu0
        %v305 = vadd.f32 0.0, %v304
        %v306 = vpop.f32.mrb[0].mxu0
        %v307 = vpop.f32.mrb[0].mxu0
        %308 = vdwg.mxu0
        %v309 = vpack.c.bf16 %v303, %v303
        %v310 = vpack.c.bf16 %v305, %v305
        %311 = vmatprep.subr.bf16.mxu0 %v310
        %312 = vmatpush1.bf16.xpose.msra.mxu0 %v309
        %313 = vmatprep.subr.bf16.mxu0 0
        %314 = vmatpush1.bf16.xpose.msra.mxu0 0
        %315 = vmatprep.subr.bf16.mxu0 0
        %316 = vmatpush1.bf16.xpose.msra.mxu0 0
        %317 = vmatprep.subr.bf16.mxu0 0
        %318 = vmatpush1.bf16.xpose.msra.mxu0 0
        %319 = vmatprep.subr.bf16.mxu0 0
        %320 = vmatpush1.bf16.xpose.msra.mxu0 0
        %321 = vmatprep.subr.bf16.mxu0 0
        %322 = vmatpush1.bf16.xpose.msra.mxu0 0
        %323 = vmatprep.subr.bf16.mxu0 0
        %324 = vmatpush1.bf16.xpose.msra.mxu0 0
        %325 = vmatprep.subr.bf16.mxu0 0
        %326 = vmatpush1.bf16.xpose.msra.mxu0 0
        %327 = vmatprep.subr.bf16.mxu0 0
        %328 = vmatpush1.bf16.xpose.msra.mxu0 0
        %329 = vmatprep.subr.bf16.mxu0 0
        %330 = vmatpush1.bf16.xpose.msra.mxu0 0
        %331 = vmatprep.subr.bf16.mxu0 0
        %332 = vmatpush1.bf16.xpose.msra.mxu0 0
        %333 = vmatprep.subr.bf16.mxu0 0
        %334 = vmatpush1.bf16.xpose.msra.mxu0 0
        %335 = vmatprep.subr.bf16.mxu0 0
        %336 = vmatpush1.bf16.xpose.msra.mxu0 0
        %337 = vmatprep.subr.bf16.mxu0 0
        %338 = vmatpush1.bf16.xpose.msra.mxu0 0
        %339 = vmatprep.subr.bf16.mxu0 0
        %340 = vmatpush1.bf16.xpose.msra.mxu0 0
        %341 = vmatprep.subr.bf16.mxu0 0
        %342 = vmatpush1.bf16.xpose.msra.mxu0 0
        %343 = vmatprep.mubr.bf16.mxu0 %v261
        %344 = vmatmul.mubr.bf16.gmra.mrb[0].mxu0 %v260
        %v345 = vpop.f32.mrb[0].mxu0
        %v346 = vadd.f32 0.0, %v345
        %v347 = vpop.f32.mrb[0].mxu0
        %v348 = vpop.f32.mrb[0].mxu0
        %v349 = vadd.f32 0.0, %v348
        %v350 = vpop.f32.mrb[0].mxu0
        %351 = vdwg.mxu0
        %v352 = vpack.c.bf16 %v349, %v346
        %v354 = vsel %vm264, %v248, 0
        %356 = vmatprep.subr.bf16.mxu0 0
        %357 = vmatpush1.bf16.msra.mxu0 %v352
        %358 = vmatprep.subr.bf16.mxu0 0
        %359 = vmatpush1.bf16.msra.mxu0 0
        %360 = vmatprep.subr.bf16.mxu0 0
        %361 = vmatpush1.bf16.msra.mxu0 0
        %362 = vmatprep.subr.bf16.mxu0 0
        %363 = vmatpush1.bf16.msra.mxu0 0
        %364 = vmatprep.subr.bf16.mxu0 0
        %365 = vmatpush1.bf16.msra.mxu0 0
        %366 = vmatprep.subr.bf16.mxu0 0
        %367 = vmatpush1.bf16.msra.mxu0 0
        %368 = vmatprep.subr.bf16.mxu0 0
        %369 = vmatpush1.bf16.msra.mxu0 0
        %370 = vmatprep.subr.bf16.mxu0 0
        %371 = vmatpush1.bf16.msra.mxu0 0
        %372 = vmatprep.subr.bf16.mxu0 0
        %373 = vmatpush1.bf16.msra.mxu0 0
        %374 = vmatprep.subr.bf16.mxu0 0
        %375 = vmatpush1.bf16.msra.mxu0 0
        %376 = vmatprep.subr.bf16.mxu0 0
        %377 = vmatpush1.bf16.msra.mxu0 0
        %378 = vmatprep.subr.bf16.mxu0 0
        %379 = vmatpush1.bf16.msra.mxu0 0
        %380 = vmatprep.subr.bf16.mxu0 0
        %381 = vmatpush1.bf16.msra.mxu0 0
        %382 = vmatprep.subr.bf16.mxu0 0
        %383 = vmatpush1.bf16.msra.mxu0 0
        %384 = vmatprep.subr.bf16.mxu0 0
        %385 = vmatpush1.bf16.msra.mxu0 0
        %386 = vmatprep.subr.bf16.mxu0 0
        %387 = vmatpush1.bf16.msra.mxu0 0
        %388 = vmatprep.mubr.bf16.mxu0 0
        %389 = vmatmul.mubr.bf16.gmra.mrb[0].mxu0 %v354
        %v390 = vpop.f32.mrb[0].mxu0
        %v391 = vadd.f32 0.0, %v390
        %v392 = vpop.f32.mrb[0].mxu0
        %v393 = vpop.f32.mrb[0].mxu0
        %v394 = vadd.f32 0.0, %v393
        %v395 = vpop.f32.mrb[0].mxu0
        %396 = vdwg.mxu0
        %vm397 = vcmask 31744
        %v399 = vsel %vm397, %v391, 0
        %v402 = vsel %vm397, %v394, 0
        %vm404 = vcmask 1043456
        %v406 = vsel %vm404, %v249, 0
        %408 = vmatprep.subr.mxu0 0.0
        %409 = vmatpush1.msra.mxu0 %v406
        %410 = vmatprep.subr.mxu0 0.0
        %411 = vmatpush1.msra.mxu0 0.0
        %412 = vmatprep.subr.mxu0 0.0
        %413 = vmatpush1.msra.mxu0 0.0
        %414 = vmatprep.subr.mxu0 0.0
        %415 = vmatpush1.msra.mxu0 0.0
        %416 = vmatprep.subr.mxu0 0.0
        %417 = vmatpush1.msra.mxu0 0.0
        %418 = vmatprep.subr.mxu0 0.0
        %419 = vmatpush1.msra.mxu0 0.0
        %420 = vmatprep.subr.mxu0 0.0
        %421 = vmatpush1.msra.mxu0 0.0
        %422 = vmatprep.subr.mxu0 0.0
        %423 = vmatpush1.msra.mxu0 0.0
        %424 = vmatprep.subr.mxu0 0.0
        %425 = vmatpush1.msra.mxu0 0.0
        %426 = vmatprep.subr.mxu0 0.0
        %427 = vmatpush1.msra.mxu0 0.0
        %428 = vmatprep.subr.mxu0 0.0
        %429 = vmatpush1.msra.mxu0 0.0
        %430 = vmatprep.subr.mxu0 0.0
        %431 = vmatpush1.msra.mxu0 0.0
        %432 = vmatprep.subr.mxu0 0.0
        %433 = vmatpush1.msra.mxu0 0.0
        %434 = vmatprep.subr.mxu0 0.0
        %435 = vmatpush1.msra.mxu0 0.0
        %436 = vmatprep.subr.mxu0 0.0
        %437 = vmatpush1.msra.mxu0 0.0
        %438 = vmatprep.subr.mxu0 0.0
        %439 = vmatpush1.msra.mxu0 0.0
        %440 = vmatprep.subr.mxu0 0.0
        %441 = vmatpush1.msra.mxu0 0.0
        %442 = vmatprep.subr.mxu0 0.0
        %443 = vmatpush1.msra.mxu0 0.0
        %444 = vmatprep.subr.mxu0 0.0
        %445 = vmatpush1.msra.mxu0 0.0
        %446 = vmatprep.subr.mxu0 0.0
        %447 = vmatpush1.msra.mxu0 0.0
        %448 = vmatprep.subr.mxu0 0.0
        %449 = vmatpush1.msra.mxu0 0.0
        %450 = vmatprep.subr.mxu0 0.0
        %451 = vmatpush1.msra.mxu0 0.0
        %452 = vmatprep.subr.mxu0 0.0
        %453 = vmatpush1.msra.mxu0 0.0
        %454 = vmatprep.subr.mxu0 0.0
        %455 = vmatpush1.msra.mxu0 0.0
        %456 = vmatprep.subr.mxu0 0.0
        %457 = vmatpush1.msra.mxu0 0.0
        %458 = vmatprep.subr.mxu0 0.0
        %459 = vmatpush1.msra.mxu0 0.0
        %460 = vmatprep.subr.mxu0 0.0
        %461 = vmatpush1.msra.mxu0 0.0
        %462 = vmatprep.subr.mxu0 0.0
        %463 = vmatpush1.msra.mxu0 0.0
        %464 = vmatprep.subr.mxu0 0.0
        %465 = vmatpush1.msra.mxu0 0.0
        %466 = vmatprep.subr.mxu0 0.0
        %467 = vmatpush1.msra.mxu0 0.0
        %468 = vmatprep.subr.mxu0 0.0
        %469 = vmatpush1.msra.mxu0 0.0
        %470 = vmatprep.subr.mxu0 0.0
        %471 = vmatpush1.msra.mxu0 0.0
        %472 = vmatprep.mubr.f32.mxu0 0.0
        %473 = vmatmul.mubr.f32.gmra.mrb[0].mxu0 %v399
        %v474 = vpop.f32.mrb[0].mxu0
        %v475 = vadd.f32 %v250, %v474
        %v476 = vpop.f32.mrb[0].mxu0
        %477 = vmatprep.mubr.f32.mxu0 0.0
        %478 = vmatmul.mubr.f32.gmra.mrb[0].mxu0 %v402
        %v479 = vpop.f32.mrb[0].mxu0
        %v480 = vadd.f32 %v251, %v479
        %v481 = vpop.f32.mrb[0].mxu0
        %482 = vdwg.mxu0
        %v483 = vpack.c.bf16 %v480, %v475
        %v485 = vsel %vm397, %v483, 0
        %vm487 = vcmask 1041408
        %v489 = vsel %vm487, %v309, 0
        %v492 = vsel %vm487, %v310, 0
        %494 = vmatprep.subr.bf16.mxu0 %v492
        %495 = vmatpush1.bf16.msra.mxu0 %v489
        %496 = vmatprep.subr.bf16.mxu0 0
        %497 = vmatpush1.bf16.msra.mxu0 0
        %498 = vmatprep.subr.bf16.mxu0 0
        %499 = vmatpush1.bf16.msra.mxu0 0
        %500 = vmatprep.subr.bf16.mxu0 0
        %501 = vmatpush1.bf16.msra.mxu0 0
        %502 = vmatprep.subr.bf16.mxu0 0
        %503 = vmatpush1.bf16.msra.mxu0 0
        %504 = vmatprep.subr.bf16.mxu0 0
        %505 = vmatpush1.bf16.msra.mxu0 0
        %506 = vmatprep.subr.bf16.mxu0 0
        %507 = vmatpush1.bf16.msra.mxu0 0
        %508 = vmatprep.subr.bf16.mxu0 0
        %509 = vmatpush1.bf16.msra.mxu0 0
        %510 = vmatprep.subr.bf16.mxu0 0
        %511 = vmatpush1.bf16.msra.mxu0 0
        %512 = vmatprep.subr.bf16.mxu0 0
        %513 = vmatpush1.bf16.msra.mxu0 0
        %514 = vmatprep.subr.bf16.mxu0 0
        %515 = vmatpush1.bf16.msra.mxu0 0
        %516 = vmatprep.subr.bf16.mxu0 0
        %517 = vmatpush1.bf16.msra.mxu0 0
        %518 = vmatprep.subr.bf16.mxu0 0
        %519 = vmatpush1.bf16.msra.mxu0 0
        %520 = vmatprep.subr.bf16.mxu0 0
        %521 = vmatpush1.bf16.msra.mxu0 0
        %522 = vmatprep.subr.bf16.mxu0 0
        %523 = vmatpush1.bf16.msra.mxu0 0
        %524 = vmatprep.subr.bf16.mxu0 0
        %525 = vmatpush1.bf16.msra.mxu0 0
        %526 = vmatprep.mubr.bf16.mxu0 0
        %527 = vmatmul.mubr.bf16.gmra.mrb[0].mxu0 %v485
        %v528 = vpop.f32.mrb[0].mxu0
        %v529 = vadd.f32 0.0, %v528
        %v530 = vpop.f32.mrb[0].mxu0
        %v531 = vadd.f32 0.0, %v530
        %v532 = vpop.f32.mrb[0].mxu0
        %v533 = vadd.f32 0.0, %v532
        %v534 = vpop.f32.mrb[0].mxu0
        %v535 = vadd.f32 0.0, %v534
        %536 = vdwg.mxu0
        %v537 = vunpack.c.l.bf16 %v252
        %v538 = vunpack.c.h.bf16 %v252
        %v539 = vunpack.c.l.bf16 %v253
        %v540 = vunpack.c.h.bf16 %v253
        %v541 = vadd.f32 %v537, %v529
        %v542 = vadd.f32 %v538, %v531
        %v543 = vadd.f32 %v539, %v533
        %v544 = vadd.f32 %v540, %v535
        %v545 = vmax.f32 %v541, 0.0
        %v546 = vmax.f32 %v542, 0.0
        %v547 = vmax.f32 %v543, 0.0
        %v548 = vmax.f32 %v544, 0.0
        %549 = vst [vmem:[%s242] sm:$0xff] %v545
        %550 = vst [vmem:[%s242 + $0x8] sm:$0xff] %v546
        %551 = vst [vmem:[%s242 + $0x10] sm:$0xff] %v547
        %552 = vst [vmem:[%s242 + $0x18] sm:$0xff] %v548
        %s553 = sand.u32 %s140, 1
        %s554 = scalar_lea.sflag [#allocation4], %s553
        %s555 = sand.u32 %s140, 1
        %s556 = smul.addr %s555, 32
        %s557 = scalar_lea.vmem [#allocation5], %s556
        // Predicated region
        $region45: #{tpu_custom_call.1} parent=39 // pred_check
          %p558 = pneg %p150
        $region46: #{tpu_custom_call.1} parent=39 // pred_check_branch
          %560 = sbr.rel (%p558) target = $region48
        $region47: #{tpu_custom_call.1} parent=39 // pred_region
          %s562 = ssub.s32 512, 512
          %563 = vsyncadd %s554, %s562
          %s564 = smul.addr %s22, 4
          %s565 = smul.addr %s564, 128
          %s566 = scalar_lea.hbm %s5, %s565
          %s567 = sshll.u32 %s557, 4
          %s568 = int_to_ptr.vmem [resolvable:$true] %s567
          %573 = dma.vmem_to_hbm [thread:$0]  %s568, 512, %s566, %s554, 256, 256, 16
        $region48: #{tpu_custom_call.1} parent=39 // pred_fallthru
          _
      $region40: #{tpu_custom_call.1} parent=5 // pred_fallthru
        _
      %p574 = scmp.le.s32.totalorder 2, %s17
      // Predicated region
      $region49: #{tpu_custom_call.1} parent=5 // pred_check
        %p575 = pneg %p574
      $region50: #{tpu_custom_call.1} parent=5 // pred_check_branch
        %577 = sbr.rel (%p575) target = $region52
      $region51: #{tpu_custom_call.1} parent=5 // pred_region
        %s578 = ssub.s32 %s17, 2
        // Predicated region
        $region53: #{tpu_custom_call.1} parent=51 // pred_check
          %p579 = pneg %p156
        $region54: #{tpu_custom_call.1} parent=51 // pred_check_branch
          %581 = sbr.rel (%p579) target = $region56
        $region55: #{tpu_custom_call.1} parent=51 // pred_region
          %s582 = sand.u32 %s141, 1
          %s583 = scalar_lea.sflag [#allocation4], %s582
          %s584 = sand.u32 %s141, 1
          %s585 = smul.addr %s584, 32
          %s586 = scalar_lea.vmem [#allocation5], %s585
          %587 = dma.done %s583, 512
        $region56: #{tpu_custom_call.1} parent=51 // pred_fallthru
          _
      $region52: #{tpu_custom_call.1} parent=5 // pred_fallthru
        _
    $region6: #{tpu_custom_call.1} parent=1 // loop_footer
      %s21 = sadd.s32 1, %s17
    $region7: #{tpu_custom_call.1} parent=1 // loop_footer_branch
      %16 = sbr.rel target = $region3
    $region8: #{tpu_custom_call.1} parent=1 // loop_exit
      _
    %588 = vsyncpa [#allocation3], 1
    %s589 = scalar_lea.sflag [#allocation3], 1
    %590 = vsyncpa %s589, 1
    %591 = vsyncpa [#allocation4], 1
    %s592 = scalar_lea.sflag [#allocation4], 1
    %593 = vsyncpa %s592, 1

</llo_original>
